<compile_context>
chip_gen: v7x
topology: tpu7x:2x2x1
jax: 0.10.0
libtpu: 0.0.40
codegen_flags: <defaults>
</compile_context>

<pallas_src>
import jax
import jax.numpy as jnp
from jax.experimental import pallas as pl
from jax.experimental.pallas import tpu as pltpu

LEAKY_SLOPE = 0.2
BN_EPS = 1e-5


# -----------------------------------------------------------------------------
# Kernel
# -----------------------------------------------------------------------------
def make_kernel(n_hidden):
    """Kernel over one batch tile.

    refs = (xT_ref, w0, b0, ..., w_{n-1}, b_{n-1}, w_out, b_out, o_ref)
      xT_ref : (in_feat, TB)      activations, batch on lanes
      w_l    : (h_l, h_{l-1})     BN-folded linear weight (PyTorch (out, in) layout)
      b_l    : (h_l, 1)           BN-folded bias column
      w_out  : (h_last, 1)        final linear weight as a column
      b_out  : (1, 1)
      o_ref  : (1, TB)            lane-dense sigmoid output
    """

    def kernel(*refs):
        xT_ref = refs[0]
        o_ref = refs[-1]
        p = refs[1:-1]

        h = xT_ref[...]                                           # (in_feat, TB)
        for l in range(n_hidden):
            w = p[2 * l][...]                                     # (h_l, prev)
            b = p[2 * l + 1][...]                                 # (h_l, 1)
            h = jnp.dot(w, h, preferred_element_type=jnp.float32) + b
            h = jnp.where(h > 0, h, LEAKY_SLOPE * h)              # LeakyReLU(0.2)
            # Dropout(p=0.5): eval-mode identity.

        w_out = p[2 * n_hidden][...]                              # (h_last, 1)
        b_out = p[2 * n_hidden + 1][...]                          # (1, 1)
        # Final Linear has a single output feature: VPU multiply + sublane
        # reduction instead of an N=1 MXU matmul; result is lane-dense (1, TB).
        out = jnp.sum(w_out * h, axis=0, keepdims=True) + b_out
        o_ref[...] = jax.nn.sigmoid(out)

    return kernel


# -----------------------------------------------------------------------------
# Wrapper
# -----------------------------------------------------------------------------
def proxy_mlp_forward(x, folded_params, *, tb=128):
    """x: (B, in_feat) f32. folded_params: [w0,b0, w1,b1, ..., w_out,b_out]."""
    B, in_feat = x.shape
    n_hidden = (len(folded_params) - 2) // 2

    # Transpose so batch lives on the lane axis; pad batch to a multiple of TB.
    padded_b = ((B + tb - 1) // tb) * tb
    xT = jnp.pad(x.T, ((0, 0), (0, padded_b - B)))                # (in_feat, padded_b)
    grid = (padded_b // tb,)

    # Batch tiles move with the grid; all parameters are resident (constant map).
    in_specs = [pl.BlockSpec((in_feat, tb), lambda i: (0, i))]
    for p in folded_params:
        in_specs.append(pl.BlockSpec(p.shape, lambda i: (0, 0)))
    out_specs = pl.BlockSpec((1, tb), lambda i: (0, i))

    # Advisory cost estimate for the XLA scheduler.
    dims = [in_feat] + [int(folded_params[2 * l].shape[0]) for l in range(n_hidden)]
    flops = sum(2 * B * dims[l] * dims[l + 1] for l in range(n_hidden)) + 2 * B * dims[-1]
    param_bytes = sum(int(p.size) * 4 for p in folded_params)
    cost = pl.CostEstimate(
        flops=int(flops),
        transcendentals=int(B),                                   # sigmoid exp per row
        bytes_accessed=int(4 * (B * in_feat + B) + param_bytes),
    )

    out = pl.pallas_call(
        make_kernel(n_hidden),
        out_shape=jax.ShapeDtypeStruct((1, padded_b), jnp.float32),
        grid=grid,
        in_specs=in_specs,
        out_specs=out_specs,
        compiler_params=pltpu.CompilerParams(dimension_semantics=("parallel",)),
        cost_estimate=cost,
    )(xT, *folded_params)

    return out[0, :B].reshape(B, 1)


# -----------------------------------------------------------------------------
# Parameter construction (mirrors ProxyMLP.__init__) + BN folding
# -----------------------------------------------------------------------------
def make_raw_params(key, in_feat, hidden_layers):
    """Deterministic synthetic parameters in PyTorch layouts."""
    keys = jax.random.split(key, 6 * len(hidden_layers) + 2)
    k = iter(keys)
    hidden = []
    prev = in_feat
    for h in hidden_layers:
        w = 0.1 * jax.random.normal(next(k), (h, prev), jnp.float32)     # (out, in)
        b = 0.1 * jax.random.normal(next(k), (h,), jnp.float32)
        gamma = 1.0 + 0.1 * jax.random.normal(next(k), (h,), jnp.float32)
        beta = 0.1 * jax.random.normal(next(k), (h,), jnp.float32)
        mean = 0.1 * jax.random.normal(next(k), (h,), jnp.float32)
        var = 1.0 + 0.1 * jax.random.uniform(next(k), (h,), jnp.float32)
        hidden.append((w, b, gamma, beta, mean, var))
        prev = h
    w_out = 0.1 * jax.random.normal(next(k), (1, prev), jnp.float32)     # (1, h_last)
    b_out = 0.1 * jax.random.normal(next(k), (1,), jnp.float32)
    return {"hidden": hidden, "final": (w_out, b_out)}


def fold_params(raw):
    """Fold eval-mode BatchNorm into the preceding Linear; column-major biases."""
    folded = []
    for (w, b, gamma, beta, mean, var) in raw["hidden"]:
        scale = gamma * jax.lax.rsqrt(var + BN_EPS)                      # (h,)
        w_f = w * scale[:, None]                                         # (h, prev)
        b_f = ((b - mean) * scale + beta)[:, None]                       # (h, 1)
        folded += [w_f, b_f]
    w_out, b_out = raw["final"]
    folded += [w_out.reshape(-1, 1), b_out.reshape(1, 1)]                # (h_last,1), (1,1)
    return folded


def reference_forward(x, raw):
    """Pure-JAX reference with un-fused math (eval-mode PyTorch semantics)."""
    h = x
    for (w, b, gamma, beta, mean, var) in raw["hidden"]:
        h = h @ w.T + b
        h = (h - mean) / jnp.sqrt(var + BN_EPS) * gamma + beta
        h = jnp.where(h > 0, h, LEAKY_SLOPE * h)
    w_out, b_out = raw["final"]
    return jax.nn.sigmoid(h @ w_out.T + b_out)


# -----------------------------------------------------------------------------
# Self-test
# -----------------------------------------------------------------------------
if __name__ == "__main__":
    B, IN_FEAT = 200, 16          # B not a multiple of the tile -> exercises padding
    HIDDEN = [32, 32]
    TB = 128                      # 2 batch tiles on the grid

    key = jax.random.PRNGKey(0)
    kx, kp = jax.random.split(key)
    x = jax.random.normal(kx, (B, IN_FEAT), jnp.float32)
    raw = make_raw_params(kp, IN_FEAT, HIDDEN)
    folded = fold_params(raw)

    out = proxy_mlp_forward(x, folded, tb=TB)
    out = jax.block_until_ready(out)

    ref = reference_forward(x, raw)
    assert out.shape == (B, 1), out.shape
    assert bool(jnp.all(jnp.isfinite(out)))
    assert jnp.allclose(out, ref, atol=2e-5, rtol=2e-5), (
        float(jnp.max(jnp.abs(out - ref))))

    print("KERNEL_OK")
</pallas_src>

<mosaic_0001>
module attributes {stable_mosaic.version = 11 : i64} {
  func.func @kernel(%arg0: i32, %arg1: memref<16x128xf32, #tpu.memory_space<vmem>>, %arg2: memref<32x16xf32, #tpu.memory_space<vmem>>, %arg3: memref<32x1xf32, #tpu.memory_space<vmem>>, %arg4: memref<32x32xf32, #tpu.memory_space<vmem>>, %arg5: memref<32x1xf32, #tpu.memory_space<vmem>>, %arg6: memref<32x1xf32, #tpu.memory_space<vmem>>, %arg7: memref<1x1xf32, #tpu.memory_space<vmem>>, %arg8: memref<1x128xf32, #tpu.memory_space<vmem>>) attributes {dimension_semantics = [#tpu.dimension_semantics<parallel>], iteration_bounds = array<i64: 2>, scalar_prefetch = 0 : i64, scratch_operands = 0 : i64, tpu.core_type = #tpu.core_type<tc>, window_params = [{transform_indices = @transform_0, window_bounds = array<i64: 16, 128>}, {pipeline_mode = #tpu.pipeline_mode<synchronous>, transform_indices = @transform_1, window_bounds = array<i64: 32, 16>}, {pipeline_mode = #tpu.pipeline_mode<synchronous>, transform_indices = @transform_2, window_bounds = array<i64: 32, 1>}, {pipeline_mode = #tpu.pipeline_mode<synchronous>, transform_indices = @transform_3, window_bounds = array<i64: 32, 32>}, {pipeline_mode = #tpu.pipeline_mode<synchronous>, transform_indices = @transform_4, window_bounds = array<i64: 32, 1>}, {pipeline_mode = #tpu.pipeline_mode<synchronous>, transform_indices = @transform_5, window_bounds = array<i64: 32, 1>}, {pipeline_mode = #tpu.pipeline_mode<synchronous>, transform_indices = @transform_6, window_bounds = array<i64: 1, 1>}, {transform_indices = @transform_7, window_bounds = array<i64: 1, 128>}]} {
    %c0 = arith.constant 0 : index
    %c0_0 = arith.constant 0 : index
    %0 = vector.load %arg1[%c0, %c0_0] : memref<16x128xf32, #tpu.memory_space<vmem>>, vector<16x128xf32>
    %c0_1 = arith.constant 0 : index
    %c0_2 = arith.constant 0 : index
    %1 = vector.load %arg2[%c0_1, %c0_2] : memref<32x16xf32, #tpu.memory_space<vmem>>, vector<32x16xf32>
    %c0_3 = arith.constant 0 : index
    %c0_4 = arith.constant 0 : index
    %2 = vector.load %arg3[%c0_3, %c0_4] : memref<32x1xf32, #tpu.memory_space<vmem>>, vector<32x1xf32>
    %cst = arith.constant dense<0.000000e+00> : vector<32x128xf32>
    %3 = tpu.matmul %1, %0, %cst {dimension_numbers = #tpu.dot_dimension_numbers<[1], [0], [0], [1], [0, 0, 1, 1], [], []>} : vector<32x16xf32>, vector<16x128xf32>, vector<32x128xf32> -> vector<32x128xf32>
    %4 = vector.broadcast %2 : vector<32x1xf32> to vector<32x128xf32>
    %5 = arith.addf %3, %4 : vector<32x128xf32>
    %cst_5 = arith.constant 0.000000e+00 : f32
    %6 = vector.broadcast %cst_5 : f32 to vector<32x128xf32>
    %7 = arith.cmpf ogt, %5, %6 : vector<32x128xf32>
    %cst_6 = arith.constant 2.000000e-01 : f32
    %8 = vector.broadcast %cst_6 : f32 to vector<32x128xf32>
    %9 = arith.mulf %8, %5 : vector<32x128xf32>
    %10 = arith.select %7, %5, %9 : vector<32x128xi1>, vector<32x128xf32>
    %c0_7 = arith.constant 0 : index
    %c0_8 = arith.constant 0 : index
    %11 = vector.load %arg4[%c0_7, %c0_8] : memref<32x32xf32, #tpu.memory_space<vmem>>, vector<32x32xf32>
    %c0_9 = arith.constant 0 : index
    %c0_10 = arith.constant 0 : index
    %12 = vector.load %arg5[%c0_9, %c0_10] : memref<32x1xf32, #tpu.memory_space<vmem>>, vector<32x1xf32>
    %cst_11 = arith.constant dense<0.000000e+00> : vector<32x128xf32>
    %13 = tpu.matmul %11, %10, %cst_11 {dimension_numbers = #tpu.dot_dimension_numbers<[1], [0], [0], [1], [0, 0, 1, 1], [], []>} : vector<32x32xf32>, vector<32x128xf32>, vector<32x128xf32> -> vector<32x128xf32>
    %14 = vector.broadcast %12 : vector<32x1xf32> to vector<32x128xf32>
    %15 = arith.addf %13, %14 : vector<32x128xf32>
    %cst_12 = arith.constant 0.000000e+00 : f32
    %16 = vector.broadcast %cst_12 : f32 to vector<32x128xf32>
    %17 = arith.cmpf ogt, %15, %16 : vector<32x128xf32>
    %cst_13 = arith.constant 2.000000e-01 : f32
    %18 = vector.broadcast %cst_13 : f32 to vector<32x128xf32>
    %19 = arith.mulf %18, %15 : vector<32x128xf32>
    %20 = arith.select %17, %15, %19 : vector<32x128xi1>, vector<32x128xf32>
    %c0_14 = arith.constant 0 : index
    %c0_15 = arith.constant 0 : index
    %21 = vector.load %arg6[%c0_14, %c0_15] : memref<32x1xf32, #tpu.memory_space<vmem>>, vector<32x1xf32>
    %c0_16 = arith.constant 0 : index
    %c0_17 = arith.constant 0 : index
    %22 = vector.load %arg7[%c0_16, %c0_17] : memref<1x1xf32, #tpu.memory_space<vmem>>, vector<1x1xf32>
    %23 = vector.broadcast %21 : vector<32x1xf32> to vector<32x128xf32>
    %24 = arith.mulf %23, %20 : vector<32x128xf32>
    %cst_18 = arith.constant dense<0.000000e+00> : vector<128xf32>
    %25 = vector.multi_reduction <add>, %24, %cst_18 [0] : vector<32x128xf32> to vector<128xf32>
    %26 = vector.shape_cast %25 : vector<128xf32> to vector<1x128xf32>
    %27 = vector.broadcast %22 : vector<1x1xf32> to vector<1x128xf32>
    %28 = arith.addf %26, %27 : vector<1x128xf32>
    %29 = arith.negf %28 : vector<1x128xf32>
    %30 = math.exp %29 : vector<1x128xf32>
    %cst_19 = arith.constant 1.000000e+00 : f32
    %31 = vector.broadcast %cst_19 : f32 to vector<1x128xf32>
    %32 = arith.addf %31, %30 : vector<1x128xf32>
    %33 = arith.divf %31, %32 : vector<1x128xf32>
    %c0_20 = arith.constant 0 : index
    %c0_21 = arith.constant 0 : index
    %34 = vector.load %arg8[%c0_20, %c0_21] : memref<1x128xf32, #tpu.memory_space<vmem>>, vector<1x128xf32>
    tpu.vector_store %arg8[%c0_20, %c0_21], %33 {strides = array<i32>} : memref<1x128xf32, #tpu.memory_space<vmem>>, vector<1x128xf32>,
    return
  }
  func.func @transform_0(%arg0: i32) -> (i32, i32) {
    %c0_i32 = arith.constant 0 : i32
    %c0_i32_0 = arith.constant 0 : i32
    return %c0_i32, %arg0 : i32, i32
  }
  func.func @transform_1(%arg0: i32) -> (i32, i32) {
    %c0_i32 = arith.constant 0 : i32
    %c0_i32_0 = arith.constant 0 : i32
    %c0_i32_1 = arith.constant 0 : i32
    return %c0_i32, %c0_i32_0 : i32, i32
  }
  func.func @transform_2(%arg0: i32) -> (i32, i32) {
    %c0_i32 = arith.constant 0 : i32
    %c0_i32_0 = arith.constant 0 : i32
    %c0_i32_1 = arith.constant 0 : i32
    return %c0_i32, %c0_i32_0 : i32, i32
  }
  func.func @transform_3(%arg0: i32) -> (i32, i32) {
    %c0_i32 = arith.constant 0 : i32
    %c0_i32_0 = arith.constant 0 : i32
    %c0_i32_1 = arith.constant 0 : i32
    return %c0_i32, %c0_i32_0 : i32, i32
  }
  func.func @transform_4(%arg0: i32) -> (i32, i32) {
    %c0_i32 = arith.constant 0 : i32
    %c0_i32_0 = arith.constant 0 : i32
    %c0_i32_1 = arith.constant 0 : i32
    return %c0_i32, %c0_i32_0 : i32, i32
  }
  func.func @transform_5(%arg0: i32) -> (i32, i32) {
    %c0_i32 = arith.constant 0 : i32
    %c0_i32_0 = arith.constant 0 : i32
    %c0_i32_1 = arith.constant 0 : i32
    return %c0_i32, %c0_i32_0 : i32, i32
  }
  func.func @transform_6(%arg0: i32) -> (i32, i32) {
    %c0_i32 = arith.constant 0 : i32
    %c0_i32_0 = arith.constant 0 : i32
    %c0_i32_1 = arith.constant 0 : i32
    return %c0_i32, %c0_i32_0 : i32, i32
  }
  func.func @transform_7(%arg0: i32) -> (i32, i32) {
    %c0_i32 = arith.constant 0 : i32
    %c0_i32_0 = arith.constant 0 : i32
    return %c0_i32, %arg0 : i32, i32
  }
}

</mosaic_0001>

<llo_original>
// kernel: tpu_custom_call.1
$region0: #{tpu_custom_call.1}
  #allocation0 [shape = 'u32[]', space=smem, size = 0x4, offset = 0x4, fixed_abs, tag = 'smem constant byte address 0x4 - core index']
  #allocation1 [shape = 'u32[144,128]{1,0:T(1,128)}', space=vmem, size = 0x12000, scoped, tag = 'internal scratch']
  #allocation2 [shape = 'f32[1,1]{1,0:T(1,128)S(1)}', space=vmem, size = 0x200, scoped, tag = 'scoped memory for tpu_custom_call.1']
  %s0 = inlined_call_operand.vmem [shape: f32[16,256], index: 0, kind: input, shape index: {}]
  %s1 = inlined_call_operand.vmem [shape: f32[32,16], index: 1, kind: input, shape index: {}]
  %s2 = inlined_call_operand.vmem [shape: f32[32,1], index: 2, kind: input, shape index: {}]
  %s3 = inlined_call_operand.vmem [shape: f32[32,32], index: 3, kind: input, shape index: {}]
  %s4 = inlined_call_operand.vmem [shape: f32[32,1], index: 4, kind: input, shape index: {}]
  %s5 = inlined_call_operand.vmem [shape: f32[32,1], index: 5, kind: input, shape index: {}]
  %s6 = inlined_call_operand.<no memory space> [shape: f32[1,1], index: 6, kind: input, shape index: {}]
  %s7 = inlined_call_operand.hbm [shape: f32[1,256], index: 7, kind: output, shape index: {}]
  %s8 = sld [smem:[#allocation0]]
  $region99: #{tpu_custom_call.1} parent=0
    _
  %s10 = ssub.s32 1, %s8
  %s11 = scalar_select 0, %s10, %s8
  %v12 = vstv %s6
  %13 = vst [vmem:[#allocation2] sm:$0x1] %v12
  $region1: #{tpu_custom_call.1} parent=0
    #allocation3 [shape = 'u8[16384]{0}', space=vmem, size = 0x4000, scoped, tag = 'input window, operand 0']
    #allocation4 [shape = 'u8[1024]{0}', space=vmem, size = 0x400, scoped, tag = 'output window, operand 0']
    #allocation5 [shape = 's32[2]{0}', space=sflag, size = 0x8, scoped, tag = 'scoped memory for tpu_custom_call.1']
    %14 = vsyncpa [#allocation5], 0
    %s15 = scalar_lea.sflag [#allocation5], 1
    %16 = vsyncpa %s15, 0
    loop: start=0, step=1, limit=4
    $region2: #{tpu_custom_call.1} parent=1 // loop_pre_header
      _
    $region3: #{tpu_custom_call.1} parent=1 // loop_header
      %s18 = sphi 0, %s22
      %p19 = scmp.ge.s32.totalorder %s18, 4
      %s28 = sphi 0, %s30
      %s31 = sphi 0, %s28
      %s32 = sphi 0, %s31
      %s48 = sphi 0, %s32
      %s52 = sphi 0, %s52
      %s54 = sphi 0, %s52
      %s55 = sphi 0, %s54
      %s69 = sphi 0, %s55
      %s73 = sphi 0, %s73
      %s75 = sphi 0, %s73
      %s76 = sphi 0, %s75
      %s90 = sphi 0, %s76
      %s94 = sphi 0, %s94
      %s96 = sphi 0, %s94
      %s97 = sphi 0, %s96
      %s111 = sphi 0, %s97
      %s115 = sphi 0, %s115
      %s117 = sphi 0, %s115
      %s118 = sphi 0, %s117
      %s132 = sphi 0, %s118
      %s136 = sphi 0, %s136
      %s138 = sphi 0, %s136
      %s139 = sphi 0, %s138
      %s153 = sphi 0, %s139
      %s157 = sphi 0, %s157
      %s159 = sphi 0, %s157
      %s160 = sphi 0, %s159
      %s174 = sphi 0, %s160
      %s180 = sphi 0, %s182
      %s183 = sphi 0, %s180
      %s184 = sphi 0, %s183
      %s200 = sphi 0, %s184
    $region4: #{tpu_custom_call.1} parent=1 // loop_header_branch
      %21 = sbr.rel (%p19) target = $region8
    $region5: #{tpu_custom_call.1} parent=1 // loop_body
      %s23 = ssub.s32 %s18, 1
      %s24 = ssub.s32 %s18, 2
      %s25 = sadd.s32 %s18, 1
      %s26 = ssub.s32 %s18, %s25
      %p27 = scmp.eq.s32.totalorder %s26, 0
      %s29 = sadd.s32 %s28, 1
      %s30 = scalar_select %p27, %s28, %s29
      %p33 = pneg %p27
      %p34 = scmp.eq.s32.totalorder %s18, 1
      %p35 = por %p33, %p34
      %p36 = scmp.ne.s32.totalorder %s28, %s31
      %p37 = scmp.eq.s32.totalorder %s18, 0
      %p38 = por %p36, %p37
      %p39 = scmp.ne.s32.totalorder %s28, %s31
      %p40 = scmp.eq.s32.totalorder %s23, 1
      %p41 = por %p39, %p40
      %p42 = scmp.ne.s32.totalorder %s31, %s32
      %p43 = scmp.eq.s32.totalorder %s23, 0
      %p44 = por %p42, %p43
      %p45 = scmp.ne.s32.totalorder %s31, %s32
      %p46 = scmp.eq.s32.totalorder %s24, 1
      %p47 = por %p45, %p46
      %p49 = scmp.ne.s32.totalorder %s32, %s48
      %p50 = scmp.eq.s32.totalorder %s24, 0
      %p51 = por %p49, %p50
      %s53 = sadd.s32 %s52, 1
      %p56 = scmp.eq.s32.totalorder %s18, 1
      %p57 = scmp.ne.s32.totalorder %s52, %s54
      %p58 = scmp.eq.s32.totalorder %s18, 0
      %p59 = por %p57, %p58
      %p60 = scmp.ne.s32.totalorder %s52, %s54
      %p61 = scmp.eq.s32.totalorder %s23, 1
      %p62 = por %p60, %p61
      %p63 = scmp.ne.s32.totalorder %s54, %s55
      %p64 = scmp.eq.s32.totalorder %s23, 0
      %p65 = por %p63, %p64
      %p66 = scmp.ne.s32.totalorder %s54, %s55
      %p67 = scmp.eq.s32.totalorder %s24, 1
      %p68 = por %p66, %p67
      %p70 = scmp.ne.s32.totalorder %s55, %s69
      %p71 = scmp.eq.s32.totalorder %s24, 0
      %p72 = por %p70, %p71
      %s74 = sadd.s32 %s73, 1
      %p77 = scmp.eq.s32.totalorder %s18, 1
      %p78 = scmp.ne.s32.totalorder %s73, %s75
      %p79 = scmp.eq.s32.totalorder %s18, 0
      %p80 = por %p78, %p79
      %p81 = scmp.ne.s32.totalorder %s73, %s75
      %p82 = scmp.eq.s32.totalorder %s23, 1
      %p83 = por %p81, %p82
      %p84 = scmp.ne.s32.totalorder %s75, %s76
      %p85 = scmp.eq.s32.totalorder %s23, 0
      %p86 = por %p84, %p85
      %p87 = scmp.ne.s32.totalorder %s75, %s76
      %p88 = scmp.eq.s32.totalorder %s24, 1
      %p89 = por %p87, %p88
      %p91 = scmp.ne.s32.totalorder %s76, %s90
      %p92 = scmp.eq.s32.totalorder %s24, 0
      %p93 = por %p91, %p92
      %s95 = sadd.s32 %s94, 1
      %p98 = scmp.eq.s32.totalorder %s18, 1
      %p99 = scmp.ne.s32.totalorder %s94, %s96
      %p100 = scmp.eq.s32.totalorder %s18, 0
      %p101 = por %p99, %p100
      %p102 = scmp.ne.s32.totalorder %s94, %s96
      %p103 = scmp.eq.s32.totalorder %s23, 1
      %p104 = por %p102, %p103
      %p105 = scmp.ne.s32.totalorder %s96, %s97
      %p106 = scmp.eq.s32.totalorder %s23, 0
      %p107 = por %p105, %p106
      %p108 = scmp.ne.s32.totalorder %s96, %s97
      %p109 = scmp.eq.s32.totalorder %s24, 1
      %p110 = por %p108, %p109
      %p112 = scmp.ne.s32.totalorder %s97, %s111
      %p113 = scmp.eq.s32.totalorder %s24, 0
      %p114 = por %p112, %p113
      %s116 = sadd.s32 %s115, 1
      %p119 = scmp.eq.s32.totalorder %s18, 1
      %p120 = scmp.ne.s32.totalorder %s115, %s117
      %p121 = scmp.eq.s32.totalorder %s18, 0
      %p122 = por %p120, %p121
      %p123 = scmp.ne.s32.totalorder %s115, %s117
      %p124 = scmp.eq.s32.totalorder %s23, 1
      %p125 = por %p123, %p124
      %p126 = scmp.ne.s32.totalorder %s117, %s118
      %p127 = scmp.eq.s32.totalorder %s23, 0
      %p128 = por %p126, %p127
      %p129 = scmp.ne.s32.totalorder %s117, %s118
      %p130 = scmp.eq.s32.totalorder %s24, 1
      %p131 = por %p129, %p130
      %p133 = scmp.ne.s32.totalorder %s118, %s132
      %p134 = scmp.eq.s32.totalorder %s24, 0
      %p135 = por %p133, %p134
      %s137 = sadd.s32 %s136, 1
      %p140 = scmp.eq.s32.totalorder %s18, 1
      %p141 = scmp.ne.s32.totalorder %s136, %s138
      %p142 = scmp.eq.s32.totalorder %s18, 0
      %p143 = por %p141, %p142
      %p144 = scmp.ne.s32.totalorder %s136, %s138
      %p145 = scmp.eq.s32.totalorder %s23, 1
      %p146 = por %p144, %p145
      %p147 = scmp.ne.s32.totalorder %s138, %s139
      %p148 = scmp.eq.s32.totalorder %s23, 0
      %p149 = por %p147, %p148
      %p150 = scmp.ne.s32.totalorder %s138, %s139
      %p151 = scmp.eq.s32.totalorder %s24, 1
      %p152 = por %p150, %p151
      %p154 = scmp.ne.s32.totalorder %s139, %s153
      %p155 = scmp.eq.s32.totalorder %s24, 0
      %p156 = por %p154, %p155
      %s158 = sadd.s32 %s157, 1
      %p161 = scmp.eq.s32.totalorder %s18, 1
      %p162 = scmp.ne.s32.totalorder %s157, %s159
      %p163 = scmp.eq.s32.totalorder %s18, 0
      %p164 = por %p162, %p163
      %p165 = scmp.ne.s32.totalorder %s157, %s159
      %p166 = scmp.eq.s32.totalorder %s23, 1
      %p167 = por %p165, %p166
      %p168 = scmp.ne.s32.totalorder %s159, %s160
      %p169 = scmp.eq.s32.totalorder %s23, 0
      %p170 = por %p168, %p169
      %p171 = scmp.ne.s32.totalorder %s159, %s160
      %p172 = scmp.eq.s32.totalorder %s24, 1
      %p173 = por %p171, %p172
      %p175 = scmp.ne.s32.totalorder %s160, %s174
      %p176 = scmp.eq.s32.totalorder %s24, 0
      %p177 = por %p175, %p176
      %s178 = ssub.s32 %s18, %s25
      %p179 = scmp.eq.s32.totalorder %s178, 0
      %s181 = sadd.s32 %s180, 1
      %s182 = scalar_select %p179, %s180, %s181
      %p185 = pneg %p179
      %p186 = scmp.eq.s32.totalorder %s18, 1
      %p187 = por %p185, %p186
      %p188 = scmp.ne.s32.totalorder %s180, %s183
      %p189 = scmp.eq.s32.totalorder %s18, 0
      %p190 = por %p188, %p189
      %p191 = scmp.ne.s32.totalorder %s180, %s183
      %p192 = scmp.eq.s32.totalorder %s23, 1
      %p193 = por %p191, %p192
      %p194 = scmp.ne.s32.totalorder %s183, %s184
      %p195 = scmp.eq.s32.totalorder %s23, 0
      %p196 = por %p194, %p195
      %p197 = scmp.ne.s32.totalorder %s183, %s184
      %p198 = scmp.eq.s32.totalorder %s24, 1
      %p199 = por %p197, %p198
      %p201 = scmp.ne.s32.totalorder %s184, %s200
      %p202 = scmp.eq.s32.totalorder %s24, 0
      %p203 = por %p201, %p202
      %p204 = scmp.le.s32.totalorder 1, %s18
      %p205 = scmp.lt.s32.totalorder %s18, 3
      %p206 = pnand %p204, %p205
      %p207 = pneg %p206
      // Predicated region
      $region9: #{tpu_custom_call.1} parent=5 // pred_check
        _
      $region10: #{tpu_custom_call.1} parent=5 // pred_check_branch
        %209 = sbr.rel (%p206) target = $region12
      $region11: #{tpu_custom_call.1} parent=5 // pred_region
        %s210 = ssub.s32 %s18, 1
        // Predicated region
        $region13: #{tpu_custom_call.1} parent=11 // pred_check
          %p211 = pneg %p65
        $region14: #{tpu_custom_call.1} parent=11 // pred_check_branch
          %213 = sbr.rel (%p211) target = $region16
        $region15: #{tpu_custom_call.1} parent=11 // pred_region
          _
        $region16: #{tpu_custom_call.1} parent=11 // pred_fallthru
          _
        // Predicated region
        $region17: #{tpu_custom_call.1} parent=11 // pred_check
          %p214 = pneg %p86
        $region18: #{tpu_custom_call.1} parent=11 // pred_check_branch
          %216 = sbr.rel (%p214) target = $region20
        $region19: #{tpu_custom_call.1} parent=11 // pred_region
          _
        $region20: #{tpu_custom_call.1} parent=11 // pred_fallthru
          _
        // Predicated region
        $region21: #{tpu_custom_call.1} parent=11 // pred_check
          %p217 = pneg %p107
        $region22: #{tpu_custom_call.1} parent=11 // pred_check_branch
          %219 = sbr.rel (%p217) target = $region24
        $region23: #{tpu_custom_call.1} parent=11 // pred_region
          _
        $region24: #{tpu_custom_call.1} parent=11 // pred_fallthru
          _
        // Predicated region
        $region25: #{tpu_custom_call.1} parent=11 // pred_check
          %p220 = pneg %p128
        $region26: #{tpu_custom_call.1} parent=11 // pred_check_branch
          %222 = sbr.rel (%p220) target = $region28
        $region27: #{tpu_custom_call.1} parent=11 // pred_region
          _
        $region28: #{tpu_custom_call.1} parent=11 // pred_fallthru
          _
        // Predicated region
        $region29: #{tpu_custom_call.1} parent=11 // pred_check
          %p223 = pneg %p149
        $region30: #{tpu_custom_call.1} parent=11 // pred_check_branch
          %225 = sbr.rel (%p223) target = $region32
        $region31: #{tpu_custom_call.1} parent=11 // pred_region
          _
        $region32: #{tpu_custom_call.1} parent=11 // pred_fallthru
          _
        // Predicated region
        $region33: #{tpu_custom_call.1} parent=11 // pred_check
          %p226 = pneg %p170
        $region34: #{tpu_custom_call.1} parent=11 // pred_check_branch
          %228 = sbr.rel (%p226) target = $region36
        $region35: #{tpu_custom_call.1} parent=11 // pred_region
          _
        $region36: #{tpu_custom_call.1} parent=11 // pred_fallthru
          _
      $region12: #{tpu_custom_call.1} parent=5 // pred_fallthru
        _
      %p229 = scmp.lt.s32.totalorder %s18, 2
      // Predicated region
      $region37: #{tpu_custom_call.1} parent=5 // pred_check
        %p230 = pneg %p229
      $region38: #{tpu_custom_call.1} parent=5 // pred_check_branch
        %232 = sbr.rel (%p230) target = $region40
      $region39: #{tpu_custom_call.1} parent=5 // pred_region
        // Predicated region
        $region41: #{tpu_custom_call.1} parent=39 // pred_check
          %p233 = pneg %p38
        $region42: #{tpu_custom_call.1} parent=39 // pred_check_branch
          %235 = sbr.rel (%p233) target = $region44
        $region43: #{tpu_custom_call.1} parent=39 // pred_region
          %s236 = sand.u32 %s28, 1
          %s237 = sand.u32 %s28, 1
          %s238 = smul.addr %s237, 16
          %s239 = scalar_lea.vmem [#allocation3], %s238
          %s240 = smul.addr %s18, 8
          %s241 = scalar_lea.vmem %s0, %s240
          // Predicated region
          $region45: #{tpu_custom_call.1} parent=43 // pred_check
            _
          $region46: #{tpu_custom_call.1} parent=43 // pred_check_branch
            %243 = sbr.rel (0) target = $region48
          $region47: #{tpu_custom_call.1} parent=43 // pred_region
            // Predicated region
            $region49: #{tpu_custom_call.1} parent=47 // pred_check
              _
            $region50: #{tpu_custom_call.1} parent=47 // pred_check_branch
              %245 = sbr.rel (0) target = $region52
            $region51: #{tpu_custom_call.1} parent=47 // pred_region
              // Predicated region
              $region64: #{tpu_custom_call.1} parent=51 // pred_check
                _
              $region65: #{tpu_custom_call.1} parent=51 // pred_check_branch
                %262 = sbr.rel (0) target = $region67
              $region66: #{tpu_custom_call.1} parent=51 // pred_region
                loop: start=0, step=1, limit=1
                $region68: #{tpu_custom_call.1} parent=66 // loop_pre_header
                  _
                $region69: #{tpu_custom_call.1} parent=66 // loop_header
                  %s264 = sphi 0, %s268
                  %p265 = scmp.ge.s32.totalorder %s264, 1
                  %s269 = sphi %s241, %s241
                  %s270 = sphi %s239, %s239
                $region70: #{tpu_custom_call.1} parent=66 // loop_header_branch
                  %267 = sbr.rel (%p265) target = $region74
                $region71: #{tpu_custom_call.1} parent=66 // loop_body
                  %v271 = vld [vmem:[%s269] sm:$0xff]
                  %272 = vst [vmem:[%s270] sm:$0xff] %v271
                  %v273 = vld [vmem:[%s269 + $0x10] sm:$0xff]
                  %274 = vst [vmem:[%s270 + $0x8] sm:$0xff] %v273
                $region72: #{tpu_custom_call.1} parent=66 // loop_footer
                  %s268 = sadd.s32 1, %s264
                $region73: #{tpu_custom_call.1} parent=66 // loop_footer_branch
                  %263 = sbr.rel target = $region69
                $region74: #{tpu_custom_call.1} parent=66 // loop_exit
                  _
              $region67: #{tpu_custom_call.1} parent=51 // pred_fallthru
                _
              // Predicated region
              $region75: #{tpu_custom_call.1} parent=51 // pred_check
                _
              $region76: #{tpu_custom_call.1} parent=51 // pred_check_branch
                %276 = sbr.rel target = $region78
              $region77: #{tpu_custom_call.1} parent=51 // pred_region
                _
              $region78: #{tpu_custom_call.1} parent=51 // pred_fallthru
                _
            $region52: #{tpu_custom_call.1} parent=47 // pred_fallthru
              _
            // Predicated region
            $region53: #{tpu_custom_call.1} parent=47 // pred_check
              _
            $region54: #{tpu_custom_call.1} parent=47 // pred_check_branch
              %247 = sbr.rel target = $region56
            $region55: #{tpu_custom_call.1} parent=47 // pred_region
              loop: start=0, step=1, limit=1
              $region57: #{tpu_custom_call.1} parent=55 // loop_pre_header
                _
              $region58: #{tpu_custom_call.1} parent=55 // loop_header
                %s250 = sphi 0, %s254
                %p251 = scmp.ge.s32.totalorder %s250, 1
                %s255 = sphi %s241, %s241
                %s256 = sphi %s239, %s239
              $region59: #{tpu_custom_call.1} parent=55 // loop_header_branch
                %253 = sbr.rel (%p251) target = $region63
              $region60: #{tpu_custom_call.1} parent=55 // loop_body
                %v257 = vld [vmem:[%s255] sm:$0xff]
                %258 = vst [vmem:[%s256] sm:$0xff] %v257
                %v259 = vld [vmem:[%s255 + $0x10] sm:$0xff]
                %260 = vst [vmem:[%s256 + $0x8] sm:$0xff] %v259
              $region61: #{tpu_custom_call.1} parent=55 // loop_footer
                %s254 = sadd.s32 1, %s250
              $region62: #{tpu_custom_call.1} parent=55 // loop_footer_branch
                %249 = sbr.rel target = $region58
              $region63: #{tpu_custom_call.1} parent=55 // loop_exit
                _
            $region56: #{tpu_custom_call.1} parent=47 // pred_fallthru
              _
          $region48: #{tpu_custom_call.1} parent=43 // pred_fallthru
            _
          %277 = vnop
        $region44: #{tpu_custom_call.1} parent=39 // pred_fallthru
          _
      $region40: #{tpu_custom_call.1} parent=5 // pred_fallthru
        _
      %p278 = scmp.le.s32.totalorder 1, %s18
      %p279 = scmp.lt.s32.totalorder %s18, 3
      %p280 = pnand %p278, %p279
      %p281 = pneg %p280
      // Predicated region
      $region79: #{tpu_custom_call.1} parent=5 // pred_check
        _
      $region80: #{tpu_custom_call.1} parent=5 // pred_check_branch
        %283 = sbr.rel (%p280) target = $region82
      $region81: #{tpu_custom_call.1} parent=5 // pred_region
        %s284 = ssub.s32 %s18, 1
        %s285 = sand.u32 %s31, 1
        %s286 = sand.u32 %s31, 1
        %s287 = smul.addr %s286, 16
        %s288 = scalar_lea.vmem [#allocation3], %s287
        // Predicated region
        $region83: #{tpu_custom_call.1} parent=81 // pred_check
          %p289 = pneg %p44
        $region84: #{tpu_custom_call.1} parent=81 // pred_check_branch
          %291 = sbr.rel (%p289) target = $region86
        $region85: #{tpu_custom_call.1} parent=81 // pred_region
          _
        $region86: #{tpu_custom_call.1} parent=81 // pred_fallthru
          _
        %s292 = sand.u32 %s31, 1
        %s293 = sand.u32 %s31, 1
        %s294 = smul.addr %s293, 16
        %s295 = scalar_lea.vmem [#allocation3], %s294
        %p296 = pneg %p44
        %p297 = pneg %p41
        %p298 = pneg %p65
        %p299 = pneg %p62
        %p300 = pneg %p86
        %p301 = pneg %p83
        %p302 = pneg %p107
        %p303 = pneg %p104
        %p304 = pneg %p128
        %p305 = pneg %p125
        %p306 = pneg %p149
        %p307 = pneg %p146
        %p308 = pneg %p170
        %p309 = pneg %p167
        %p310 = pneg %p196
        %p311 = pneg %p193
        %s312 = sand.u32 %s183, 1
        %s313 = scalar_lea.sflag [#allocation5], %s312
        %s314 = sand.u32 %s183, 1
        %s315 = scalar_lea.vmem [#allocation4], %s314
        %v316 = vld [vmem:[%s288] sm:$0xff]
        %v317 = vld [vmem:[%s288 + $0x8] sm:$0xff]
        %v318 = vld [vmem:[%s1] sm:$0xff]
        %v319 = vld [vmem:[%s1 + $0x8] sm:$0xff]
        %v320 = vld [vmem:[%s1 + $0x10] sm:$0xff]
        %v321 = vld [vmem:[%s1 + $0x18] sm:$0xff]
        %v322 = vld [vmem:[%s2] sm:$0xff]
        %v323 = vld [vmem:[%s2 + $0x8] sm:$0xff]
        %v324 = vld [vmem:[%s2 + $0x10] sm:$0xff]
        %v325 = vld [vmem:[%s2 + $0x18] sm:$0xff]
        %327 = vset.pattern.permute.xlu0 0
        %328 = vperm.xlu0 %327, %v322
        %v329 = vpop.permute.xlu0 %328
        %332 = vset.pattern.permute.xlu0 0
        %333 = vperm.xlu0 %332, %v323
        %v334 = vpop.permute.xlu0 %333
        %337 = vset.pattern.permute.xlu0 0
        %338 = vperm.xlu0 %337, %v324
        %v339 = vpop.permute.xlu0 %338
        %342 = vset.pattern.permute.xlu0 0
        %343 = vperm.xlu0 %342, %v325
        %v344 = vpop.permute.xlu0 %343
        %vm346 = vcmask 130048
        %v348 = vsel %vm346, %v318, 0
        %v351 = vsel %vm346, %v319, 0
        %v354 = vsel %vm346, %v320, 0
        %v357 = vsel %vm346, %v321, 0
        %359 = vmatprep.subr.mxu0 0.0
        %360 = vmatpush1.msra.mxu0 %v316
        %361 = vmatprep.subr.mxu0 0.0
        %362 = vmatpush1.msra.mxu0 %v317
        %363 = vmatprep.subr.mxu0 0.0
        %364 = vmatpush1.msra.mxu0 0.0
        %365 = vmatprep.subr.mxu0 0.0
        %366 = vmatpush1.msra.mxu0 0.0
        %367 = vmatprep.subr.mxu0 0.0
        %368 = vmatpush1.msra.mxu0 0.0
        %369 = vmatprep.subr.mxu0 0.0
        %370 = vmatpush1.msra.mxu0 0.0
        %371 = vmatprep.subr.mxu0 0.0
        %372 = vmatpush1.msra.mxu0 0.0
        %373 = vmatprep.subr.mxu0 0.0
        %374 = vmatpush1.msra.mxu0 0.0
        %375 = vmatprep.subr.mxu0 0.0
        %376 = vmatpush1.msra.mxu0 0.0
        %377 = vmatprep.subr.mxu0 0.0
        %378 = vmatpush1.msra.mxu0 0.0
        %379 = vmatprep.subr.mxu0 0.0
        %380 = vmatpush1.msra.mxu0 0.0
        %381 = vmatprep.subr.mxu0 0.0
        %382 = vmatpush1.msra.mxu0 0.0
        %383 = vmatprep.subr.mxu0 0.0
        %384 = vmatpush1.msra.mxu0 0.0
        %385 = vmatprep.subr.mxu0 0.0
        %386 = vmatpush1.msra.mxu0 0.0
        %387 = vmatprep.subr.mxu0 0.0
        %388 = vmatpush1.msra.mxu0 0.0
        %389 = vmatprep.subr.mxu0 0.0
        %390 = vmatpush1.msra.mxu0 0.0
        %391 = vmatprep.subr.mxu0 0.0
        %392 = vmatpush1.msra.mxu0 0.0
        %393 = vmatprep.subr.mxu0 0.0
        %394 = vmatpush1.msra.mxu0 0.0
        %395 = vmatprep.subr.mxu0 0.0
        %396 = vmatpush1.msra.mxu0 0.0
        %397 = vmatprep.subr.mxu0 0.0
        %398 = vmatpush1.msra.mxu0 0.0
        %399 = vmatprep.subr.mxu0 0.0
        %400 = vmatpush1.msra.mxu0 0.0
        %401 = vmatprep.subr.mxu0 0.0
        %402 = vmatpush1.msra.mxu0 0.0
        %403 = vmatprep.subr.mxu0 0.0
        %404 = vmatpush1.msra.mxu0 0.0
        %405 = vmatprep.subr.mxu0 0.0
        %406 = vmatpush1.msra.mxu0 0.0
        %407 = vmatprep.subr.mxu0 0.0
        %408 = vmatpush1.msra.mxu0 0.0
        %409 = vmatprep.subr.mxu0 0.0
        %410 = vmatpush1.msra.mxu0 0.0
        %411 = vmatprep.subr.mxu0 0.0
        %412 = vmatpush1.msra.mxu0 0.0
        %413 = vmatprep.subr.mxu0 0.0
        %414 = vmatpush1.msra.mxu0 0.0
        %415 = vmatprep.subr.mxu0 0.0
        %416 = vmatpush1.msra.mxu0 0.0
        %417 = vmatprep.subr.mxu0 0.0
        %418 = vmatpush1.msra.mxu0 0.0
        %419 = vmatprep.subr.mxu0 0.0
        %420 = vmatpush1.msra.mxu0 0.0
        %421 = vmatprep.subr.mxu0 0.0
        %422 = vmatpush1.msra.mxu0 0.0
        %423 = vmatprep.mubr.f32.mxu0 0.0
        %424 = vmatmul.mubr.f32.gmra.mrb[0].mxu0 %v348
        %v425 = vpop.f32.mrb[0].mxu0
        %v426 = vadd.f32 %v329, %v425
        %v427 = vpop.f32.mrb[0].mxu0
        %428 = vmatprep.mubr.f32.mxu0 0.0
        %429 = vmatmul.mubr.f32.gmra.mrb[0].mxu0 %v351
        %v430 = vpop.f32.mrb[0].mxu0
        %v431 = vadd.f32 %v334, %v430
        %v432 = vpop.f32.mrb[0].mxu0
        %433 = vmatprep.mubr.f32.mxu0 0.0
        %434 = vmatmul.mubr.f32.gmra.mrb[0].mxu0 %v354
        %v435 = vpop.f32.mrb[0].mxu0
        %v436 = vadd.f32 %v339, %v435
        %v437 = vpop.f32.mrb[0].mxu0
        %438 = vmatprep.mubr.f32.mxu0 0.0
        %439 = vmatmul.mubr.f32.gmra.mrb[0].mxu0 %v357
        %v440 = vpop.f32.mrb[0].mxu0
        %v441 = vadd.f32 %v344, %v440
        %v442 = vpop.f32.mrb[0].mxu0
        %443 = vdwg.mxu0
        %vm444 = vcmp.gt.f32.partialorder %v426, 0.0
        %vm445 = vcmp.gt.f32.partialorder %v431, 0.0
        %vm446 = vcmp.gt.f32.partialorder %v436, 0.0
        %vm447 = vcmp.gt.f32.partialorder %v441, 0.0
        %v448 = vmul.f32 %v426, 0.2
        %v449 = vmul.f32 %v431, 0.2
        %v450 = vmul.f32 %v436, 0.2
        %v451 = vmul.f32 %v441, 0.2
        %v452 = vsel %vm444, %v426, %v448
        %v453 = vsel %vm445, %v431, %v449
        %v454 = vsel %vm446, %v436, %v450
        %v455 = vsel %vm447, %v441, %v451
        %v456 = vld [vmem:[%s3] sm:$0xff]
        %v457 = vld [vmem:[%s3 + $0x8] sm:$0xff]
        %v458 = vld [vmem:[%s3 + $0x10] sm:$0xff]
        %v459 = vld [vmem:[%s3 + $0x18] sm:$0xff]
        %v460 = vld [vmem:[%s4] sm:$0xff]
        %v461 = vld [vmem:[%s4 + $0x8] sm:$0xff]
        %v462 = vld [vmem:[%s4 + $0x10] sm:$0xff]
        %v463 = vld [vmem:[%s4 + $0x18] sm:$0xff]
        %465 = vset.pattern.permute.xlu0 0
        %466 = vperm.xlu0 %465, %v460
        %v467 = vpop.permute.xlu0 %466
        %470 = vset.pattern.permute.xlu0 0
        %471 = vperm.xlu0 %470, %v461
        %v472 = vpop.permute.xlu0 %471
        %475 = vset.pattern.permute.xlu0 0
        %476 = vperm.xlu0 %475, %v462
        %v477 = vpop.permute.xlu0 %476
        %480 = vset.pattern.permute.xlu0 0
        %481 = vperm.xlu0 %480, %v463
        %v482 = vpop.permute.xlu0 %481
        %vm484 = vcmask 261120
        %v486 = vsel %vm484, %v456, 0
        %v489 = vsel %vm484, %v457, 0
        %v492 = vsel %vm484, %v458, 0
        %v495 = vsel %vm484, %v459, 0
        %497 = vmatprep.subr.mxu0 0.0
        %498 = vmatpush1.msra.mxu0 %v452
        %499 = vmatprep.subr.mxu0 0.0
        %500 = vmatpush1.msra.mxu0 %v453
        %501 = vmatprep.subr.mxu0 0.0
        %502 = vmatpush1.msra.mxu0 %v454
        %503 = vmatprep.subr.mxu0 0.0
        %504 = vmatpush1.msra.mxu0 %v455
        %505 = vmatprep.subr.mxu0 0.0
        %506 = vmatpush1.msra.mxu0 0.0
        %507 = vmatprep.subr.mxu0 0.0
        %508 = vmatpush1.msra.mxu0 0.0
        %509 = vmatprep.subr.mxu0 0.0
        %510 = vmatpush1.msra.mxu0 0.0
        %511 = vmatprep.subr.mxu0 0.0
        %512 = vmatpush1.msra.mxu0 0.0
        %513 = vmatprep.subr.mxu0 0.0
        %514 = vmatpush1.msra.mxu0 0.0
        %515 = vmatprep.subr.mxu0 0.0
        %516 = vmatpush1.msra.mxu0 0.0
        %517 = vmatprep.subr.mxu0 0.0
        %518 = vmatpush1.msra.mxu0 0.0
        %519 = vmatprep.subr.mxu0 0.0
        %520 = vmatpush1.msra.mxu0 0.0
        %521 = vmatprep.subr.mxu0 0.0
        %522 = vmatpush1.msra.mxu0 0.0
        %523 = vmatprep.subr.mxu0 0.0
        %524 = vmatpush1.msra.mxu0 0.0
        %525 = vmatprep.subr.mxu0 0.0
        %526 = vmatpush1.msra.mxu0 0.0
        %527 = vmatprep.subr.mxu0 0.0
        %528 = vmatpush1.msra.mxu0 0.0
        %529 = vmatprep.subr.mxu0 0.0
        %530 = vmatpush1.msra.mxu0 0.0
        %531 = vmatprep.subr.mxu0 0.0
        %532 = vmatpush1.msra.mxu0 0.0
        %533 = vmatprep.subr.mxu0 0.0
        %534 = vmatpush1.msra.mxu0 0.0
        %535 = vmatprep.subr.mxu0 0.0
        %536 = vmatpush1.msra.mxu0 0.0
        %537 = vmatprep.subr.mxu0 0.0
        %538 = vmatpush1.msra.mxu0 0.0
        %539 = vmatprep.subr.mxu0 0.0
        %540 = vmatpush1.msra.mxu0 0.0
        %541 = vmatprep.subr.mxu0 0.0
        %542 = vmatpush1.msra.mxu0 0.0
        %543 = vmatprep.subr.mxu0 0.0
        %544 = vmatpush1.msra.mxu0 0.0
        %545 = vmatprep.subr.mxu0 0.0
        %546 = vmatpush1.msra.mxu0 0.0
        %547 = vmatprep.subr.mxu0 0.0
        %548 = vmatpush1.msra.mxu0 0.0
        %549 = vmatprep.subr.mxu0 0.0
        %550 = vmatpush1.msra.mxu0 0.0
        %551 = vmatprep.subr.mxu0 0.0
        %552 = vmatpush1.msra.mxu0 0.0
        %553 = vmatprep.subr.mxu0 0.0
        %554 = vmatpush1.msra.mxu0 0.0
        %555 = vmatprep.subr.mxu0 0.0
        %556 = vmatpush1.msra.mxu0 0.0
        %557 = vmatprep.subr.mxu0 0.0
        %558 = vmatpush1.msra.mxu0 0.0
        %559 = vmatprep.subr.mxu0 0.0
        %560 = vmatpush1.msra.mxu0 0.0
        %561 = vmatprep.mubr.f32.mxu0 0.0
        %562 = vmatmul.mubr.f32.gmra.mrb[0].mxu0 %v486
        %v563 = vpop.f32.mrb[0].mxu0
        %v564 = vadd.f32 %v467, %v563
        %v565 = vpop.f32.mrb[0].mxu0
        %566 = vmatprep.mubr.f32.mxu0 0.0
        %567 = vmatmul.mubr.f32.gmra.mrb[0].mxu0 %v489
        %v568 = vpop.f32.mrb[0].mxu0
        %v569 = vadd.f32 %v472, %v568
        %v570 = vpop.f32.mrb[0].mxu0
        %571 = vmatprep.mubr.f32.mxu0 0.0
        %572 = vmatmul.mubr.f32.gmra.mrb[0].mxu0 %v492
        %v573 = vpop.f32.mrb[0].mxu0
        %v574 = vadd.f32 %v477, %v573
        %v575 = vpop.f32.mrb[0].mxu0
        %576 = vmatprep.mubr.f32.mxu0 0.0
        %577 = vmatmul.mubr.f32.gmra.mrb[0].mxu0 %v495
        %v578 = vpop.f32.mrb[0].mxu0
        %v579 = vadd.f32 %v482, %v578
        %v580 = vpop.f32.mrb[0].mxu0
        %581 = vdwg.mxu0
        %vm582 = vcmp.gt.f32.partialorder %v564, 0.0
        %vm583 = vcmp.gt.f32.partialorder %v569, 0.0
        %vm584 = vcmp.gt.f32.partialorder %v574, 0.0
        %vm585 = vcmp.gt.f32.partialorder %v579, 0.0
        %v586 = vmul.f32 %v564, 0.2
        %v587 = vmul.f32 %v569, 0.2
        %v588 = vmul.f32 %v574, 0.2
        %v589 = vmul.f32 %v579, 0.2
        %v590 = vsel %vm582, %v564, %v586
        %v591 = vsel %vm583, %v569, %v587
        %v592 = vsel %vm584, %v574, %v588
        %v593 = vsel %vm585, %v579, %v589
        %v594 = vld [vmem:[%s5] sm:$0xff]
        %v595 = vld [vmem:[%s5 + $0x8] sm:$0xff]
        %v596 = vld [vmem:[%s5 + $0x10] sm:$0xff]
        %v597 = vld [vmem:[%s5 + $0x18] sm:$0xff]
        %v598 = vld [vmem:[#allocation2] sm:$0x1]
        %600 = vset.pattern.permute.xlu0 0
        %601 = vperm.xlu0 %600, %v594
        %v602 = vpop.permute.xlu0 %601
        %605 = vset.pattern.permute.xlu0 0
        %606 = vperm.xlu0 %605, %v595
        %v607 = vpop.permute.xlu0 %606
        %610 = vset.pattern.permute.xlu0 0
        %611 = vperm.xlu0 %610, %v596
        %v612 = vpop.permute.xlu0 %611
        %615 = vset.pattern.permute.xlu0 0
        %616 = vperm.xlu0 %615, %v597
        %v617 = vpop.permute.xlu0 %616
        %v619 = vmul.f32 %v602, %v590
        %v620 = vmul.f32 %v607, %v591
        %v621 = vmul.f32 %v612, %v592
        %v622 = vmul.f32 %v617, %v593
        %v623 = vadd.f32 %v619, %v620
        %v624 = vadd.f32 %v623, %v621
        %v625 = vadd.f32 %v624, %v622
        %v626 = vrot.slane %v625, 4
        %v627 = vadd.f32 %v625, %v626
        %v628 = vrot.slane %v627, 2
        %v629 = vadd.f32 %v627, %v628
        %v630 = vrot.slane %v629, 1
        %v631 = vadd.f32 %v629, %v630
        %633 = vset.pattern.permute.xlu0 0
        %634 = vperm.xlu0 %633, %v598
        %v635 = vpop.permute.xlu0 %634
        %v637 = vlaneseq
        %v638 = vshrl.u32 %v637, 7
        %v639 = vsub.s32 0, %v638
        %v640 = vrot.slane %v635, %v639
        %v641 = vadd.f32 %v631, %v640
        %v642 = vxor.u32 %v641, 2147483648
        %v643 = vmul.f32 %v642, 1.442695
        %v644 = vpow.pop %v643
        %v645 = vadd.f32 %v644, 1.0
        %v646 = vrcp.pop %v645
        %v647 = vmul.f32 1.0, %v646
        %648 = vst [vmem:[%s315] sm:$0x1] %v647
        %s649 = sand.u32 %s183, 1
        %s650 = scalar_lea.sflag [#allocation5], %s649
        %s651 = sand.u32 %s183, 1
        %s652 = scalar_lea.vmem [#allocation4], %s651
        // Predicated region
        $region87: #{tpu_custom_call.1} parent=81 // pred_check
          %p653 = pneg %p193
        $region88: #{tpu_custom_call.1} parent=81 // pred_check_branch
          %655 = sbr.rel (%p653) target = $region90
        $region89: #{tpu_custom_call.1} parent=81 // pred_region
          %s657 = ssub.s32 16, 16
          %658 = vsyncadd %s650, %s657
          %s659 = smul.addr %s23, 16
          %s660 = scalar_lea.hbm %s7, %s659
          %s662 = sshll.u32 %s652, 4
          %s663 = int_to_ptr.vmem [resolvable:$true] %s662
          %665 = dma.vmem_to_hbm [thread:$0]  %s663, 16, %s660, %s650
        $region90: #{tpu_custom_call.1} parent=81 // pred_fallthru
          _
      $region82: #{tpu_custom_call.1} parent=5 // pred_fallthru
        _
      %p666 = scmp.le.s32.totalorder 2, %s18
      // Predicated region
      $region91: #{tpu_custom_call.1} parent=5 // pred_check
        %p667 = pneg %p666
      $region92: #{tpu_custom_call.1} parent=5 // pred_check_branch
        %669 = sbr.rel (%p667) target = $region94
      $region93: #{tpu_custom_call.1} parent=5 // pred_region
        %s670 = ssub.s32 %s18, 2
        // Predicated region
        $region95: #{tpu_custom_call.1} parent=93 // pred_check
          %p671 = pneg %p199
        $region96: #{tpu_custom_call.1} parent=93 // pred_check_branch
          %673 = sbr.rel (%p671) target = $region98
        $region97: #{tpu_custom_call.1} parent=93 // pred_region
          %s674 = sand.u32 %s184, 1
          %s675 = scalar_lea.sflag [#allocation5], %s674
          %s676 = sand.u32 %s184, 1
          %s677 = scalar_lea.vmem [#allocation4], %s676
          %678 = dma.done %s675, 16
        $region98: #{tpu_custom_call.1} parent=93 // pred_fallthru
          _
      $region94: #{tpu_custom_call.1} parent=5 // pred_fallthru
        _
    $region6: #{tpu_custom_call.1} parent=1 // loop_footer
      %s22 = sadd.s32 1, %s18
    $region7: #{tpu_custom_call.1} parent=1 // loop_footer_branch
      %17 = sbr.rel target = $region3
    $region8: #{tpu_custom_call.1} parent=1 // loop_exit
      _
    %679 = vsyncpa [#allocation5], 1
    %s680 = scalar_lea.sflag [#allocation5], 1
    %681 = vsyncpa %s680, 1

</llo_original>
